<compile_context>
chip_gen: v7x
topology: tpu7x:2x2x1
jax: 0.10.0
libtpu: 0.0.40
codegen_flags: <defaults>
</compile_context>

<pallas_src>
import jax
import jax.numpy as jnp
from jax import lax
from jax.experimental import pallas as pl
from jax.experimental.pallas import tpu as pltpu


def _round_up(x, m):
    return (x + m - 1) // m * m


def _cdiv(a, b):
    return -(-a // b)


def tcn_forward(x, params, *, kernel_size=2, dilation_base=1,
                storage_dtype=jnp.bfloat16, out_dtype=None, time_tile=None):
    """Fused TCN forward.

    x       : (N, C_in, L) array, PyTorch NCL layout.
    params  : list of (v, g, b) weight_norm parametrizations per layer.
    returns : (N, C_last, L_last) in `out_dtype` (default x.dtype), matching
              nn.Sequential(weight_norm(Conv1d(..., padding=(K-1)*d//2)), ReLU(), ...).
    """
    N, C_in, L = (int(s) for s in x.shape)
    K = int(kernel_size)
    nl = len(params)
    out_dtype = out_dtype or x.dtype
    sbytes = jnp.dtype(storage_dtype).itemsize
    xbytes = jnp.dtype(x.dtype).itemsize
    obytes = jnp.dtype(out_dtype).itemsize

    chans = [int(p[0].shape[0]) for p in params]
    c_last = chans[-1]
    row_mult = 16 if sbytes == 2 else 8          # bf16 sublane packing
    c_pad = _round_up(max([C_in] + chans), row_mult)

    # ---- static per-layer geometry (matches torch.nn.Conv1d, stride=1) ----
    dils = [dilation_base ** i for i in range(nl)]
    pads = [(K - 1) * d // 2 for d in dils]
    Ls = [L]                                     # Ls[i] = length of layer-i input
    for i in range(nl):
        l_out = Ls[-1] + 2 * pads[i] - dils[i] * (K - 1)
        assert l_out > 0, "sequence too short for this kernel size / dilation"
        Ls.append(l_out)
    L_fin = Ls[-1]

    # halo geometry (suffix sums):  ps[i] = left halo of layer-i input w.r.t. final
    # output origin, rs[i] = right halo.  ps[i] + rs[i] = remaining receptive field.
    ps = [0] * (nl + 1)
    rs = [0] * (nl + 1)
    for i in range(nl - 1, -1, -1):
        ps[i] = ps[i + 1] + pads[i]
        rs[i] = rs[i + 1] + (K - 1) * dils[i] - pads[i]
    RF = ps[0] + rs[0]

    H_halo = _round_up(max(ps[0], rs[0], 1), 128)     # halo-block width (lane aligned)

    # ---- time tile selection against a v7x-safe VMEM budget ----
    if time_tile is None:
        budget = 24 << 20
        per_col = 2 * c_pad * sbytes + 2 * C_in * xbytes + 2 * c_last * obytes
        t = _round_up(max(512, H_halo), H_halo)
        while 2 * t <= 16384 and (2 * t + RF + 256) * per_col <= budget:
            t *= 2
        time_tile = t
    TL = _round_up(max(int(time_tile), H_halo), H_halo)

    multi = L_fin > TL
    if not multi:
        TL = L_fin
        n_tiles = 1
    else:
        n_tiles = _cdiv(L_fin, TL)

    # per-layer buffer widths: W[i] = TL + remaining receptive field at layer i
    W = [TL + ps[i] + rs[i] for i in range(nl + 1)]
    A0 = _round_up(ps[0], 128) if ps[0] > 0 else 0    # 128-aligned origin of the bulk
    base0 = A0 - ps[0]                                # layer-0 slab origin in the buffer
    W_buf = _round_up(base0 + W[0], 128)

    use_prev = multi and ps[0] > 0
    use_next = multi and rs[0] > 0
    folded = (K * c_pad) >= 128                       # deep-contraction single-dot path

    # ---- weight_norm parameter prep (tiny, plain JAX): w = g * v / ||v||_(Cin,K) ----
    w_list, b_list = [], []
    for (v, g, b) in params:
        v = jnp.asarray(v, jnp.float32)
        g = jnp.asarray(g, jnp.float32)
        b = jnp.asarray(b, jnp.float32)
        co, ci, kk = v.shape
        assert kk == K
        nrm = jnp.sqrt(jnp.sum(v * v, axis=(1, 2), keepdims=True))
        w = v * (g[:, None, None] / nrm)              # (co, ci, K)
        w = jnp.transpose(w, (0, 2, 1))               # (co, K, ci)
        w = jnp.pad(w, ((0, c_pad - co), (0, 0), (0, c_pad - ci)))
        w_list.append(w.reshape(c_pad, K * c_pad))
        b_list.append(jnp.pad(b, (0, c_pad - co)).reshape(c_pad, 1))
    w_all = jnp.stack(w_list).astype(storage_dtype)   # (nl, c_pad, K*c_pad)
    b_all = jnp.stack(b_list).astype(jnp.float32)     # (nl, c_pad, 1)  (f32 epilogue)

    # ---- BlockSpecs ----
    if multi:
        nb_halo = _cdiv(L, H_halo)
        r = TL // H_halo
        x_specs, x_args = [], []
        if use_prev:
            x_specs.append(pl.BlockSpec(
                (1, C_in, H_halo),
                lambda n, t: (n, 0, jnp.maximum(t * r - 1, 0))))
            x_args.append(x)
        x_specs.append(pl.BlockSpec((1, C_in, TL), lambda n, t: (n, 0, t)))
        x_args.append(x)
        if use_next:
            x_specs.append(pl.BlockSpec(
                (1, C_in, H_halo),
                lambda n, t: (n, 0, jnp.minimum((t + 1) * r, nb_halo - 1))))
            x_args.append(x)
    else:
        x_specs = [pl.BlockSpec((1, C_in, L), lambda n, t: (n, 0, 0))]
        x_args = [x]
    n_x = len(x_specs)

    # ---- the fused kernel (whole layer stack, one time tile of one batch element) ----
    def kernel(*refs):
        x_refs = refs[:n_x]
        w_ref, b_ref, o_ref, buf_a, buf_b = refs[n_x:]
        t0 = pl.program_id(1) * TL                     # absolute origin of this tile

        # -- stage layer-0 activations (padding / boundary handling stays in VMEM) --
        if multi:
            def put(dst_lo, piece, abs_lo):
                rows, width = piece.shape
                col = lax.broadcasted_iota(jnp.int32, (rows, width), 1)
                a = t0 + abs_lo + col
                ok = (a >= 0) & (a < L)                # zero outside the real sequence
                buf_a[0:C_in, dst_lo:dst_lo + width] = (
                    jnp.where(ok, piece, 0).astype(storage_dtype))

            idx = 0
            if use_prev:
                put(base0, x_refs[idx][0][:, H_halo - ps[0]:H_halo], -ps[0])
                idx += 1
            put(A0, x_refs[idx][0], 0)                 # bulk store, 128-aligned origin
            idx += 1
            if use_next:
                put(A0 + TL, x_refs[idx][0][:, 0:rs[0]], TL)
            if c_pad > C_in:
                buf_a[C_in:c_pad, base0:base0 + W[0]] = (
                    jnp.zeros((c_pad - C_in, W[0]), storage_dtype))
        else:
            if ps[0] > 0:                              # zero only the halo columns
                buf_a[:, base0:A0] = jnp.zeros((c_pad, ps[0]), storage_dtype)
                buf_a[:, A0 + L:A0 + L + ps[0]] = jnp.zeros((c_pad, ps[0]), storage_dtype)
            buf_a[0:C_in, A0:A0 + L] = x_refs[0][0].astype(storage_dtype)
            if c_pad > C_in:                           # ... and the padded channel rows
                buf_a[C_in:c_pad, A0:A0 + L] = (
                    jnp.zeros((c_pad - C_in, L), storage_dtype))

        # -- layer stack: activations ping-pong between the two VMEM buffers --
        src, dst = buf_a, buf_b
        for i in range(nl):
            d = dils[i]
            w_out = W[i + 1]
            off = base0 if i == 0 else 0               # pad offset folded into reads

            if folded:
                if K == 1:
                    xk = src[:, off:off + w_out]
                else:
                    xk = jnp.concatenate(
                        [src[:, off + k * d:off + k * d + w_out] for k in range(K)],
                        axis=0)
                acc = jnp.dot(w_ref[i], xk, preferred_element_type=jnp.float32)
            else:
                # K accumulating MXU matmuls (no concat temp): first dot inits, rest add.
                acc = jnp.dot(w_ref[i, :, 0:c_pad], src[:, off:off + w_out],
                              preferred_element_type=jnp.float32)
                for k in range(1, K):
                    acc = acc + jnp.dot(
                        w_ref[i, :, k * c_pad:(k + 1) * c_pad],
                        src[:, off + k * d:off + k * d + w_out],
                        preferred_element_type=jnp.float32)

            y = jnp.maximum(acc + b_ref[i], 0.0)       # bias + ReLU, f32 epilogue

            if i == nl - 1:
                o_ref[0] = y[0:c_last, :].astype(o_ref.dtype)
            else:
                if pads[i + 1] > 0:
                    # next layer's symmetric zero padding: zero columns that fall
                    # outside this layer's valid output range [0, Ls[i+1]).
                    col = lax.broadcasted_iota(jnp.int32, (c_pad, w_out), 1)
                    a = t0 - ps[i + 1] + col
                    ok = (a >= 0) & (a < Ls[i + 1])
                    y = jnp.where(ok, y, 0.0)
                dst[:, 0:w_out] = y.astype(storage_dtype)   # aligned bulk store
                src, dst = dst, src

    # ---- VMEM budget / compiler params ----
    x_cols = (TL if multi else L) + H_halo * (int(use_prev) + int(use_next))
    vmem_need = (2 * c_pad * W_buf * sbytes                      # ping-pong scratch
                 + 2 * C_in * x_cols * xbytes                    # double-buffered x blocks
                 + 2 * c_last * TL * obytes                      # double-buffered out block
                 + 2 * nl * c_pad * (K * c_pad * sbytes + 4))    # weights + bias
    vmem_limit = int(min(96 << 20, max(32 << 20, int(1.4 * vmem_need) + (4 << 20))))

    return pl.pallas_call(
        kernel,
        out_shape=jax.ShapeDtypeStruct((N, c_last, L_fin), out_dtype),
        grid=(N, n_tiles),
        in_specs=x_specs + [
            pl.BlockSpec((nl, c_pad, K * c_pad), lambda n, t: (0, 0, 0)),
            pl.BlockSpec((nl, c_pad, 1), lambda n, t: (0, 0, 0)),
        ],
        out_specs=pl.BlockSpec((1, c_last, TL), lambda n, t: (n, 0, t)),
        scratch_shapes=[
            pltpu.VMEM((c_pad, W_buf), storage_dtype),
            pltpu.VMEM((c_pad, W_buf), storage_dtype),
        ],
        compiler_params=pltpu.CompilerParams(
            dimension_semantics=("parallel", "parallel"),
            vmem_limit_bytes=vmem_limit),
    )(*x_args, w_all, b_all)


def make_tcn_params(key, input_channels, num_channels, kernel_size):
    """Deterministic synthetic parameters (weight_norm parametrization: v, g, bias)."""
    params = []
    for i, out_ch in enumerate(num_channels):
        in_ch = input_channels if i == 0 else num_channels[i - 1]
        key, kv, kg, kb = jax.random.split(key, 4)
        v = 0.1 * jax.random.normal(kv, (out_ch, in_ch, kernel_size), jnp.float32)
        g = 1.0 + 0.05 * jax.random.normal(kg, (out_ch,), jnp.float32)
        b = 0.02 * jax.random.normal(kb, (out_ch,), jnp.float32)
        params.append((v, g, b))
    return params


def _reference_forward(x, params, *, kernel_size=2, dilation_base=1):
    """Pure-JAX reference (lax.conv_general_dilated) for a sanity check."""
    for i, (v, g, b) in enumerate(params):
        d = dilation_base ** i
        p = (kernel_size - 1) * d // 2
        nrm = jnp.sqrt(jnp.sum(v * v, axis=(1, 2), keepdims=True))
        w = v * (g[:, None, None] / nrm)
        y = jax.lax.conv_general_dilated(
            x, w, window_strides=(1,), padding=[(p, p)], rhs_dilation=(d,),
            dimension_numbers=("NCH", "OIH", "NCH"),
            precision=jax.lax.Precision.HIGHEST)
        x = jnp.maximum(y + b[None, :, None], 0.0)
    return x


if __name__ == "__main__":
    def _check(key, N, C_in, L, num_channels, K, dbase, storage, tol, time_tile=None):
        key, kx = jax.random.split(key)
        x = jax.random.normal(kx, (N, C_in, L), jnp.float32)
        params = make_tcn_params(key, C_in, num_channels, K)
        out = tcn_forward(x, params, kernel_size=K, dilation_base=dbase,
                          storage_dtype=storage, time_tile=time_tile)
        out = jax.block_until_ready(out)
        ref = _reference_forward(x, params, kernel_size=K, dilation_base=dbase)
        assert out.shape == ref.shape, (out.shape, ref.shape)
        err = float(jnp.max(jnp.abs(out.astype(jnp.float32) - ref)))
        assert err <= tol, err

    key = jax.random.PRNGKey(0)
    # Small shapes consistent with the module: batch=2, input_channels=4, seq=16.
    _check(key, 2, 4, 16, (8, 8), 2, 1, jnp.float32, 1e-2)
    # Dilation / odd kernel / channel padding, bf16 storage (single time tile).
    _check(key, 2, 4, 16, (8, 12, 8), 3, 2, jnp.bfloat16, 5e-2)
    # Time-tiled path (forced small tile): halo blocks, boundary masks, partial tiles.
    _check(key, 2, 4, 520, (8, 12, 8), 3, 2, jnp.bfloat16, 5e-2, time_tile=256)
    # Even-kernel (no padding, length-shrinking) multi-tile path with right halo only.
    _check(key, 2, 4, 300, (8, 8), 2, 1, jnp.bfloat16, 5e-2, time_tile=128)

    print("KERNEL_OK")
</pallas_src>

<mosaic_0001>
module attributes {stable_mosaic.version = 11 : i64} {
  func.func @kernel(%arg0: i32, %arg1: i32, %arg2: memref<1x4x16xf32, #tpu.memory_space<vmem>>, %arg3: memref<2x8x16xf32, #tpu.memory_space<vmem>>, %arg4: memref<2x8x1xf32, #tpu.memory_space<vmem>>, %arg5: memref<1x8x14xf32, #tpu.memory_space<vmem>>, %arg6: memref<8x128xf32, #tpu.memory_space<vmem>>, %arg7: memref<8x128xf32, #tpu.memory_space<vmem>>) attributes {dimension_semantics = [#tpu.dimension_semantics<parallel>, #tpu.dimension_semantics<parallel>], iteration_bounds = array<i64: 2, 1>, scalar_prefetch = 0 : i64, scratch_operands = 2 : i64, tpu.core_type = #tpu.core_type<tc>, window_params = [{transform_indices = @transform_0, window_bounds = array<i64: 1, 4, 16>}, {pipeline_mode = #tpu.pipeline_mode<synchronous>, transform_indices = @transform_1, window_bounds = array<i64: 2, 8, 16>}, {pipeline_mode = #tpu.pipeline_mode<synchronous>, transform_indices = @transform_2, window_bounds = array<i64: 2, 8, 1>}, {transform_indices = @transform_3, window_bounds = array<i64: 1, 8, 14>}]} {
    %c0 = arith.constant 0 : index
    %c0_0 = arith.constant 0 : index
    %c0_1 = arith.constant 0 : index
    %0 = vector.load %arg2[%c0, %c0_0, %c0_1] : memref<1x4x16xf32, #tpu.memory_space<vmem>>, vector<1x4x16xf32>
    %1 = vector.shape_cast %0 : vector<1x4x16xf32> to vector<4x16xf32>
    %c0_2 = arith.constant 0 : index
    %c0_3 = arith.constant 0 : index
    %2 = vector.load %arg6[%c0_2, %c0_3] : memref<8x128xf32, #tpu.memory_space<vmem>>, vector<4x16xf32>
    tpu.vector_store %arg6[%c0_2, %c0_3], %1 {strides = array<i32>} : memref<8x128xf32, #tpu.memory_space<vmem>>, vector<4x16xf32>,
    %cst = arith.constant 0.000000e+00 : f32
    %3 = vector.broadcast %cst : f32 to vector<4x16xf32>
    %c4 = arith.constant 4 : index
    %c0_4 = arith.constant 0 : index
    %4 = vector.load %arg6[%c4, %c0_4] : memref<8x128xf32, #tpu.memory_space<vmem>>, vector<4x16xf32>
    tpu.vector_store %arg6[%c4, %c0_4], %3 {strides = array<i32>} : memref<8x128xf32, #tpu.memory_space<vmem>>, vector<4x16xf32>,
    %c0_5 = arith.constant 0 : index
    %c0_6 = arith.constant 0 : index
    %c0_7 = arith.constant 0 : index
    %5 = vector.load %arg3[%c0_5, %c0_6, %c0_7] : memref<2x8x16xf32, #tpu.memory_space<vmem>>, vector<1x8x8xf32>
    %6 = vector.shape_cast %5 : vector<1x8x8xf32> to vector<8x8xf32>
    %c0_8 = arith.constant 0 : index
    %c0_9 = arith.constant 0 : index
    %7 = vector.load %arg6[%c0_8, %c0_9] : memref<8x128xf32, #tpu.memory_space<vmem>>, vector<8x15xf32>
    %cst_10 = arith.constant dense<0.000000e+00> : vector<8x15xf32>
    %8 = tpu.matmul %6, %7, %cst_10 {dimension_numbers = #tpu.dot_dimension_numbers<[1], [0], [0], [1], [0, 0, 1, 1], [], []>} : vector<8x8xf32>, vector<8x15xf32>, vector<8x15xf32> -> vector<8x15xf32>
    %c0_11 = arith.constant 0 : index
    %c0_12 = arith.constant 0 : index
    %c8 = arith.constant 8 : index
    %9 = vector.load %arg3[%c0_11, %c0_12, %c8] : memref<2x8x16xf32, #tpu.memory_space<vmem>>, vector<1x8x8xf32>
    %10 = vector.shape_cast %9 : vector<1x8x8xf32> to vector<8x8xf32>
    %c0_13 = arith.constant 0 : index
    %c1 = arith.constant 1 : index
    %11 = vector.load %arg6[%c0_13, %c1] : memref<8x128xf32, #tpu.memory_space<vmem>>, vector<8x15xf32>
    %cst_14 = arith.constant dense<0.000000e+00> : vector<8x15xf32>
    %12 = tpu.matmul %10, %11, %cst_14 {dimension_numbers = #tpu.dot_dimension_numbers<[1], [0], [0], [1], [0, 0, 1, 1], [], []>} : vector<8x8xf32>, vector<8x15xf32>, vector<8x15xf32> -> vector<8x15xf32>
    %13 = arith.addf %8, %12 : vector<8x15xf32>
    %c0_15 = arith.constant 0 : index
    %c0_16 = arith.constant 0 : index
    %c0_17 = arith.constant 0 : index
    %14 = vector.load %arg4[%c0_15, %c0_16, %c0_17] : memref<2x8x1xf32, #tpu.memory_space<vmem>>, vector<1x8x1xf32>
    %15 = vector.shape_cast %14 : vector<1x8x1xf32> to vector<8x1xf32>
    %16 = vector.broadcast %15 : vector<8x1xf32> to vector<8x15xf32>
    %17 = arith.addf %13, %16 : vector<8x15xf32>
    %cst_18 = arith.constant 0.000000e+00 : f32
    %18 = vector.broadcast %cst_18 : f32 to vector<8x15xf32>
    %19 = arith.maximumf %17, %18 : vector<8x15xf32>
    %c0_19 = arith.constant 0 : index
    %c0_20 = arith.constant 0 : index
    %20 = vector.load %arg7[%c0_19, %c0_20] : memref<8x128xf32, #tpu.memory_space<vmem>>, vector<8x15xf32>
    tpu.vector_store %arg7[%c0_19, %c0_20], %19 {strides = array<i32>} : memref<8x128xf32, #tpu.memory_space<vmem>>, vector<8x15xf32>,
    %c1_21 = arith.constant 1 : index
    %c0_22 = arith.constant 0 : index
    %c0_23 = arith.constant 0 : index
    %21 = vector.load %arg3[%c1_21, %c0_22, %c0_23] : memref<2x8x16xf32, #tpu.memory_space<vmem>>, vector<1x8x8xf32>
    %22 = vector.shape_cast %21 : vector<1x8x8xf32> to vector<8x8xf32>
    %c0_24 = arith.constant 0 : index
    %c0_25 = arith.constant 0 : index
    %23 = vector.load %arg7[%c0_24, %c0_25] : memref<8x128xf32, #tpu.memory_space<vmem>>, vector<8x14xf32>
    %cst_26 = arith.constant dense<0.000000e+00> : vector<8x14xf32>
    %24 = tpu.matmul %22, %23, %cst_26 {dimension_numbers = #tpu.dot_dimension_numbers<[1], [0], [0], [1], [0, 0, 1, 1], [], []>} : vector<8x8xf32>, vector<8x14xf32>, vector<8x14xf32> -> vector<8x14xf32>
    %c1_27 = arith.constant 1 : index
    %c0_28 = arith.constant 0 : index
    %c8_29 = arith.constant 8 : index
    %25 = vector.load %arg3[%c1_27, %c0_28, %c8_29] : memref<2x8x16xf32, #tpu.memory_space<vmem>>, vector<1x8x8xf32>
    %26 = vector.shape_cast %25 : vector<1x8x8xf32> to vector<8x8xf32>
    %c0_30 = arith.constant 0 : index
    %c1_31 = arith.constant 1 : index
    %27 = vector.load %arg7[%c0_30, %c1_31] : memref<8x128xf32, #tpu.memory_space<vmem>>, vector<8x14xf32>
    %cst_32 = arith.constant dense<0.000000e+00> : vector<8x14xf32>
    %28 = tpu.matmul %26, %27, %cst_32 {dimension_numbers = #tpu.dot_dimension_numbers<[1], [0], [0], [1], [0, 0, 1, 1], [], []>} : vector<8x8xf32>, vector<8x14xf32>, vector<8x14xf32> -> vector<8x14xf32>
    %29 = arith.addf %24, %28 : vector<8x14xf32>
    %c1_33 = arith.constant 1 : index
    %c0_34 = arith.constant 0 : index
    %c0_35 = arith.constant 0 : index
    %30 = vector.load %arg4[%c1_33, %c0_34, %c0_35] : memref<2x8x1xf32, #tpu.memory_space<vmem>>, vector<1x8x1xf32>
    %31 = vector.shape_cast %30 : vector<1x8x1xf32> to vector<8x1xf32>
    %32 = vector.broadcast %31 : vector<8x1xf32> to vector<8x14xf32>
    %33 = arith.addf %29, %32 : vector<8x14xf32>
    %cst_36 = arith.constant 0.000000e+00 : f32
    %34 = vector.broadcast %cst_36 : f32 to vector<8x14xf32>
    %35 = arith.maximumf %33, %34 : vector<8x14xf32>
    %c0_37 = arith.constant 0 : index
    %c0_38 = arith.constant 0 : index
    %c0_39 = arith.constant 0 : index
    %36 = vector.load %arg5[%c0_37, %c0_38, %c0_39] : memref<1x8x14xf32, #tpu.memory_space<vmem>>, vector<1x8x14xf32>
    %37 = vector.shape_cast %36 : vector<1x8x14xf32> to vector<8x14xf32>
    %38 = vector.shape_cast %35 : vector<8x14xf32> to vector<1x8x14xf32>
    tpu.vector_store %arg5[%c0_37, %c0_38, %c0_39], %38 {strides = array<i32>} : memref<1x8x14xf32, #tpu.memory_space<vmem>>, vector<1x8x14xf32>,
    return
  }
  func.func @transform_0(%arg0: i32, %arg1: i32) -> (i32, i32, i32) {
    %c0_i32 = arith.constant 0 : i32
    %c0_i32_0 = arith.constant 0 : i32
    %c0_i32_1 = arith.constant 0 : i32
    return %arg0, %c0_i32, %c0_i32_0 : i32, i32, i32
  }
  func.func @transform_1(%arg0: i32, %arg1: i32) -> (i32, i32, i32) {
    %c0_i32 = arith.constant 0 : i32
    %c0_i32_0 = arith.constant 0 : i32
    %c0_i32_1 = arith.constant 0 : i32
    %c0_i32_2 = arith.constant 0 : i32
    return %c0_i32, %c0_i32_0, %c0_i32_1 : i32, i32, i32
  }
  func.func @transform_2(%arg0: i32, %arg1: i32) -> (i32, i32, i32) {
    %c0_i32 = arith.constant 0 : i32
    %c0_i32_0 = arith.constant 0 : i32
    %c0_i32_1 = arith.constant 0 : i32
    %c0_i32_2 = arith.constant 0 : i32
    return %c0_i32, %c0_i32_0, %c0_i32_1 : i32, i32, i32
  }
  func.func @transform_3(%arg0: i32, %arg1: i32) -> (i32, i32, i32) {
    %c0_i32 = arith.constant 0 : i32
    %c0_i32_0 = arith.constant 0 : i32
    return %arg0, %c0_i32, %arg1 : i32, i32, i32
  }
}

</mosaic_0001>

<llo_original>
// kernel: tpu_custom_call.1
$region0: #{tpu_custom_call.1}
  #allocation0 [shape = 'u32[]', space=smem, size = 0x4, offset = 0x4, fixed_abs, tag = 'smem constant byte address 0x4 - core index']
  #allocation1 [shape = 'u32[144,128]{1,0:T(1,128)}', space=vmem, size = 0x12000, scoped, tag = 'internal scratch']
  #allocation2 [shape = 'f32[8,128]{1,0:T(8,128)}', space=vmem, size = 0x1000, scoped, tag = 'scratch operand']
  #allocation3 [shape = 'f32[8,128]{1,0:T(8,128)}', space=vmem, size = 0x1000, scoped, tag = 'scratch operand']
  %s0 = inlined_call_operand.hbm [shape: f32[2,4,16], index: 0, kind: input, shape index: {}]
  %s1 = inlined_call_operand.vmem [shape: f32[2,8,16], index: 1, kind: input, shape index: {}]
  %s2 = inlined_call_operand.vmem [shape: f32[2,8,1], index: 2, kind: input, shape index: {}]
  %s3 = inlined_call_operand.hbm [shape: f32[2,8,14], index: 3, kind: output, shape index: {}]
  %s4 = sld [smem:[#allocation0]]
  $region49: #{tpu_custom_call.1} parent=0
    _
  %s6 = ssub.s32 1, %s4
  %s7 = scalar_select 0, %s6, %s4
  $region1: #{tpu_custom_call.1} parent=0
    #allocation4 [shape = 'u8[4096]{0}', space=vmem, size = 0x1000, scoped, tag = 'input window, operand 0']
    #allocation5 [shape = 's32[2]{0}', space=sflag, size = 0x8, scoped, tag = 'scoped memory for tpu_custom_call.1']
    #allocation6 [shape = 's32[2]{0}', space=sflag, size = 0x8, scoped, tag = 'scoped memory for tpu_custom_call.1']
    #allocation7 [shape = 'u8[8192]{0}', space=vmem, size = 0x2000, scoped, tag = 'output window, operand 0']
    %8 = vsyncpa [#allocation5], 0
    %s9 = scalar_lea.sflag [#allocation5], 1
    %10 = vsyncpa %s9, 0
    %11 = vsyncpa [#allocation6], 0
    %s12 = scalar_lea.sflag [#allocation6], 1
    %13 = vsyncpa %s12, 0
    loop: start=0, step=1, limit=4
    $region2: #{tpu_custom_call.1} parent=1 // loop_pre_header
      _
    $region3: #{tpu_custom_call.1} parent=1 // loop_header
      %s15 = sphi 0, %s19
      %p16 = scmp.ge.s32.totalorder %s15, 4
      %s22 = sphi 0, %s34
      %s23 = sphi 0, %s30
      %s24 = sphi 0, %s22
      %s25 = sphi 0, %s23
      %s26 = sphi 0, %s24
      %s27 = sphi 0, %s25
      %s37 = sphi 0, %s39
      %s40 = sphi 0, %s37
      %s41 = sphi 0, %s40
      %s57 = sphi 0, %s41
      %s61 = sphi 0, %s61
      %s63 = sphi 0, %s61
      %s64 = sphi 0, %s63
      %s78 = sphi 0, %s64
      %s82 = sphi 0, %s82
      %s84 = sphi 0, %s82
      %s85 = sphi 0, %s84
      %s99 = sphi 0, %s85
      %s107 = sphi 0, %s109
      %s110 = sphi 0, %s107
      %s111 = sphi 0, %s110
      %s127 = sphi 0, %s111
    $region4: #{tpu_custom_call.1} parent=1 // loop_header_branch
      %18 = sbr.rel (%p16) target = $region8
    $region5: #{tpu_custom_call.1} parent=1 // loop_body
      %s20 = ssub.s32 %s15, 1
      %s21 = ssub.s32 %s15, 2
      %s28 = sadd.s32 1, %s23
      %p29 = scmp.ge.s32.totalorder %s28, 1
      %s30 = scalar_select %p29, 0, %s28
      %s31 = sadd.s32 1, %s22
      %s32 = scalar_select %p29, %s31, %s22
      %p33 = scmp.ge.s32.totalorder %s32, 2
      %s34 = scalar_select %p33, 0, %s32
      %s35 = ssub.s32 %s22, %s34
      %p36 = scmp.eq.s32.totalorder %s35, 0
      %s38 = sadd.s32 %s37, 1
      %s39 = scalar_select %p36, %s37, %s38
      %p42 = pneg %p36
      %p43 = scmp.eq.s32.totalorder %s15, 1
      %p44 = por %p42, %p43
      %p45 = scmp.ne.s32.totalorder %s37, %s40
      %p46 = scmp.eq.s32.totalorder %s15, 0
      %p47 = por %p45, %p46
      %p48 = scmp.ne.s32.totalorder %s37, %s40
      %p49 = scmp.eq.s32.totalorder %s20, 1
      %p50 = por %p48, %p49
      %p51 = scmp.ne.s32.totalorder %s40, %s41
      %p52 = scmp.eq.s32.totalorder %s20, 0
      %p53 = por %p51, %p52
      %p54 = scmp.ne.s32.totalorder %s40, %s41
      %p55 = scmp.eq.s32.totalorder %s21, 1
      %p56 = por %p54, %p55
      %p58 = scmp.ne.s32.totalorder %s41, %s57
      %p59 = scmp.eq.s32.totalorder %s21, 0
      %p60 = por %p58, %p59
      %s62 = sadd.s32 %s61, 1
      %p65 = scmp.eq.s32.totalorder %s15, 1
      %p66 = scmp.ne.s32.totalorder %s61, %s63
      %p67 = scmp.eq.s32.totalorder %s15, 0
      %p68 = por %p66, %p67
      %p69 = scmp.ne.s32.totalorder %s61, %s63
      %p70 = scmp.eq.s32.totalorder %s20, 1
      %p71 = por %p69, %p70
      %p72 = scmp.ne.s32.totalorder %s63, %s64
      %p73 = scmp.eq.s32.totalorder %s20, 0
      %p74 = por %p72, %p73
      %p75 = scmp.ne.s32.totalorder %s63, %s64
      %p76 = scmp.eq.s32.totalorder %s21, 1
      %p77 = por %p75, %p76
      %p79 = scmp.ne.s32.totalorder %s64, %s78
      %p80 = scmp.eq.s32.totalorder %s21, 0
      %p81 = por %p79, %p80
      %s83 = sadd.s32 %s82, 1
      %p86 = scmp.eq.s32.totalorder %s15, 1
      %p87 = scmp.ne.s32.totalorder %s82, %s84
      %p88 = scmp.eq.s32.totalorder %s15, 0
      %p89 = por %p87, %p88
      %p90 = scmp.ne.s32.totalorder %s82, %s84
      %p91 = scmp.eq.s32.totalorder %s20, 1
      %p92 = por %p90, %p91
      %p93 = scmp.ne.s32.totalorder %s84, %s85
      %p94 = scmp.eq.s32.totalorder %s20, 0
      %p95 = por %p93, %p94
      %p96 = scmp.ne.s32.totalorder %s84, %s85
      %p97 = scmp.eq.s32.totalorder %s21, 1
      %p98 = por %p96, %p97
      %p100 = scmp.ne.s32.totalorder %s85, %s99
      %p101 = scmp.eq.s32.totalorder %s21, 0
      %p102 = por %p100, %p101
      %s103 = ssub.s32 %s22, %s34
      %s104 = ssub.s32 %s23, %s30
      %s105 = sor.u32 %s103, %s104
      %p106 = scmp.eq.s32.totalorder %s105, 0
      %s108 = sadd.s32 %s107, 1
      %s109 = scalar_select %p106, %s107, %s108
      %p112 = pneg %p106
      %p113 = scmp.eq.s32.totalorder %s15, 1
      %p114 = por %p112, %p113
      %p115 = scmp.ne.s32.totalorder %s107, %s110
      %p116 = scmp.eq.s32.totalorder %s15, 0
      %p117 = por %p115, %p116
      %p118 = scmp.ne.s32.totalorder %s107, %s110
      %p119 = scmp.eq.s32.totalorder %s20, 1
      %p120 = por %p118, %p119
      %p121 = scmp.ne.s32.totalorder %s110, %s111
      %p122 = scmp.eq.s32.totalorder %s20, 0
      %p123 = por %p121, %p122
      %p124 = scmp.ne.s32.totalorder %s110, %s111
      %p125 = scmp.eq.s32.totalorder %s21, 1
      %p126 = por %p124, %p125
      %p128 = scmp.ne.s32.totalorder %s111, %s127
      %p129 = scmp.eq.s32.totalorder %s21, 0
      %p130 = por %p128, %p129
      %p131 = scmp.le.s32.totalorder 1, %s15
      %p132 = scmp.lt.s32.totalorder %s15, 3
      %p133 = pnand %p131, %p132
      %p134 = pneg %p133
      // Predicated region
      $region9: #{tpu_custom_call.1} parent=5 // pred_check
        _
      $region10: #{tpu_custom_call.1} parent=5 // pred_check_branch
        %136 = sbr.rel (%p133) target = $region12
      $region11: #{tpu_custom_call.1} parent=5 // pred_region
        %s137 = ssub.s32 %s15, 1
        // Predicated region
        $region13: #{tpu_custom_call.1} parent=11 // pred_check
          %p138 = pneg %p74
        $region14: #{tpu_custom_call.1} parent=11 // pred_check_branch
          %140 = sbr.rel (%p138) target = $region16
        $region15: #{tpu_custom_call.1} parent=11 // pred_region
          _
        $region16: #{tpu_custom_call.1} parent=11 // pred_fallthru
          _
        // Predicated region
        $region17: #{tpu_custom_call.1} parent=11 // pred_check
          %p141 = pneg %p95
        $region18: #{tpu_custom_call.1} parent=11 // pred_check_branch
          %143 = sbr.rel (%p141) target = $region20
        $region19: #{tpu_custom_call.1} parent=11 // pred_region
          _
        $region20: #{tpu_custom_call.1} parent=11 // pred_fallthru
          _
      $region12: #{tpu_custom_call.1} parent=5 // pred_fallthru
        _
      %p144 = scmp.lt.s32.totalorder %s15, 2
      // Predicated region
      $region21: #{tpu_custom_call.1} parent=5 // pred_check
        %p145 = pneg %p144
      $region22: #{tpu_custom_call.1} parent=5 // pred_check_branch
        %147 = sbr.rel (%p145) target = $region24
      $region23: #{tpu_custom_call.1} parent=5 // pred_region
        // Predicated region
        $region25: #{tpu_custom_call.1} parent=23 // pred_check
          %p148 = pneg %p47
        $region26: #{tpu_custom_call.1} parent=23 // pred_check_branch
          %150 = sbr.rel (%p148) target = $region28
        $region27: #{tpu_custom_call.1} parent=23 // pred_region
          %s151 = sand.u32 %s37, 1
          %s152 = scalar_lea.sflag [#allocation5], %s151
          %s153 = sand.u32 %s37, 1
          %s154 = smul.addr %s153, 4
          %s155 = scalar_lea.vmem [#allocation4], %s154
          %s157 = ssub.s32 64, 64
          %158 = vsyncadd %s152, %s157
          %s159 = smul.addr %s22, 64
          %s160 = scalar_lea.hbm %s0, %s159
          %s162 = sshll.u32 %s155, 4
          %s163 = int_to_ptr.vmem [resolvable:$true] %s162
          %165 = dma.hbm_to_vmem [thread:$0]  %s160, 64, %s163, %s152
        $region28: #{tpu_custom_call.1} parent=23 // pred_fallthru
          _
      $region24: #{tpu_custom_call.1} parent=5 // pred_fallthru
        _
      %p166 = scmp.le.s32.totalorder 1, %s15
      %p167 = scmp.lt.s32.totalorder %s15, 3
      %p168 = pnand %p166, %p167
      %p169 = pneg %p168
      // Predicated region
      $region29: #{tpu_custom_call.1} parent=5 // pred_check
        _
      $region30: #{tpu_custom_call.1} parent=5 // pred_check_branch
        %171 = sbr.rel (%p168) target = $region32
      $region31: #{tpu_custom_call.1} parent=5 // pred_region
        %s172 = ssub.s32 %s15, 1
        %s173 = sand.u32 %s40, 1
        %s174 = scalar_lea.sflag [#allocation5], %s173
        %s175 = sand.u32 %s40, 1
        %s176 = smul.addr %s175, 4
        %s177 = scalar_lea.vmem [#allocation4], %s176
        // Predicated region
        $region33: #{tpu_custom_call.1} parent=31 // pred_check
          %p178 = pneg %p53
        $region34: #{tpu_custom_call.1} parent=31 // pred_check_branch
          %180 = sbr.rel (%p178) target = $region36
        $region35: #{tpu_custom_call.1} parent=31 // pred_region
          %181 = dma.done %s174, 64
        $region36: #{tpu_custom_call.1} parent=31 // pred_fallthru
          _
        %s182 = sand.u32 %s40, 1
        %s183 = scalar_lea.sflag [#allocation5], %s182
        %s184 = sand.u32 %s40, 1
        %s185 = smul.addr %s184, 4
        %s186 = scalar_lea.vmem [#allocation4], %s185
        %p187 = pneg %p53
        %p188 = pneg %p50
        %p189 = pneg %p74
        %p190 = pneg %p71
        %p191 = pneg %p95
        %p192 = pneg %p92
        %p193 = pneg %p123
        %p194 = pneg %p120
        %s195 = sand.u32 %s110, 1
        %s196 = scalar_lea.sflag [#allocation6], %s195
        %s197 = sand.u32 %s110, 1
        %s198 = smul.addr %s197, 8
        %s199 = scalar_lea.vmem [#allocation7], %s198
        %v200 = vld [vmem:[%s177] sm:$0xf]
        %vm201 = vcmask 125952
        %202 = vst.msk [vmem:[#allocation2] sm:$0xf] %vm201, %v200
        %203 = vst.msk [vmem:[#allocation2 + $0x4] sm:$0xf] %vm201, 0.0
        %v204 = vld [vmem:[%s1] sm:$0xff]
        %v205 = vld [vmem:[#allocation2] sm:$0xff]
        %207 = vrot.lane.b32.xlu0 %v204, 120
        %v208 = vpop.permute.xlu0 %207
        %210 = vrot.lane.b32.xlu0 %v205, 127
        %v211 = vpop.permute.xlu0 %210
        %vm213 = vcmask 64512
        %v214 = vsel %vm213, %v208, 0
        %216 = vmatprep.subr.mxu0 0.0
        %217 = vmatpush1.msra.mxu0 %v211
        %218 = vmatprep.subr.mxu0 0.0
        %219 = vmatpush1.msra.mxu0 0.0
        %220 = vmatprep.subr.mxu0 0.0
        %221 = vmatpush1.msra.mxu0 0.0
        %222 = vmatprep.subr.mxu0 0.0
        %223 = vmatpush1.msra.mxu0 0.0
        %224 = vmatprep.subr.mxu0 0.0
        %225 = vmatpush1.msra.mxu0 0.0
        %226 = vmatprep.subr.mxu0 0.0
        %227 = vmatpush1.msra.mxu0 0.0
        %228 = vmatprep.subr.mxu0 0.0
        %229 = vmatpush1.msra.mxu0 0.0
        %230 = vmatprep.subr.mxu0 0.0
        %231 = vmatpush1.msra.mxu0 0.0
        %232 = vmatprep.subr.mxu0 0.0
        %233 = vmatpush1.msra.mxu0 0.0
        %234 = vmatprep.subr.mxu0 0.0
        %235 = vmatpush1.msra.mxu0 0.0
        %236 = vmatprep.subr.mxu0 0.0
        %237 = vmatpush1.msra.mxu0 0.0
        %238 = vmatprep.subr.mxu0 0.0
        %239 = vmatpush1.msra.mxu0 0.0
        %240 = vmatprep.subr.mxu0 0.0
        %241 = vmatpush1.msra.mxu0 0.0
        %242 = vmatprep.subr.mxu0 0.0
        %243 = vmatpush1.msra.mxu0 0.0
        %244 = vmatprep.subr.mxu0 0.0
        %245 = vmatpush1.msra.mxu0 0.0
        %246 = vmatprep.subr.mxu0 0.0
        %247 = vmatpush1.msra.mxu0 0.0
        %248 = vmatprep.subr.mxu0 0.0
        %249 = vmatpush1.msra.mxu0 0.0
        %250 = vmatprep.subr.mxu0 0.0
        %251 = vmatpush1.msra.mxu0 0.0
        %252 = vmatprep.subr.mxu0 0.0
        %253 = vmatpush1.msra.mxu0 0.0
        %254 = vmatprep.subr.mxu0 0.0
        %255 = vmatpush1.msra.mxu0 0.0
        %256 = vmatprep.subr.mxu0 0.0
        %257 = vmatpush1.msra.mxu0 0.0
        %258 = vmatprep.subr.mxu0 0.0
        %259 = vmatpush1.msra.mxu0 0.0
        %260 = vmatprep.subr.mxu0 0.0
        %261 = vmatpush1.msra.mxu0 0.0
        %262 = vmatprep.subr.mxu0 0.0
        %263 = vmatpush1.msra.mxu0 0.0
        %264 = vmatprep.subr.mxu0 0.0
        %265 = vmatpush1.msra.mxu0 0.0
        %266 = vmatprep.subr.mxu0 0.0
        %267 = vmatpush1.msra.mxu0 0.0
        %268 = vmatprep.subr.mxu0 0.0
        %269 = vmatpush1.msra.mxu0 0.0
        %270 = vmatprep.subr.mxu0 0.0
        %271 = vmatpush1.msra.mxu0 0.0
        %272 = vmatprep.subr.mxu0 0.0
        %273 = vmatpush1.msra.mxu0 0.0
        %274 = vmatprep.subr.mxu0 0.0
        %275 = vmatpush1.msra.mxu0 0.0
        %276 = vmatprep.subr.mxu0 0.0
        %277 = vmatpush1.msra.mxu0 0.0
        %278 = vmatprep.subr.mxu0 0.0
        %279 = vmatpush1.msra.mxu0 0.0
        %280 = vmatprep.mubr.f32.mxu0 0.0
        %281 = vmatmul.mubr.f32.gmra.mrb[0].mxu0 %v214
        %v282 = vpop.f32.mrb[0].mxu0
        %v283 = vadd.f32 0.0, %v282
        %v284 = vpop.f32.mrb[0].mxu0
        %285 = vdwg.mxu0
        %v286 = vsel %vm213, %v204, 0
        %288 = vmatprep.subr.mxu0 0.0
        %289 = vmatpush1.msra.mxu0 %v205
        %290 = vmatprep.subr.mxu0 0.0
        %291 = vmatpush1.msra.mxu0 0.0
        %292 = vmatprep.subr.mxu0 0.0
        %293 = vmatpush1.msra.mxu0 0.0
        %294 = vmatprep.subr.mxu0 0.0
        %295 = vmatpush1.msra.mxu0 0.0
        %296 = vmatprep.subr.mxu0 0.0
        %297 = vmatpush1.msra.mxu0 0.0
        %298 = vmatprep.subr.mxu0 0.0
        %299 = vmatpush1.msra.mxu0 0.0
        %300 = vmatprep.subr.mxu0 0.0
        %301 = vmatpush1.msra.mxu0 0.0
        %302 = vmatprep.subr.mxu0 0.0
        %303 = vmatpush1.msra.mxu0 0.0
        %304 = vmatprep.subr.mxu0 0.0
        %305 = vmatpush1.msra.mxu0 0.0
        %306 = vmatprep.subr.mxu0 0.0
        %307 = vmatpush1.msra.mxu0 0.0
        %308 = vmatprep.subr.mxu0 0.0
        %309 = vmatpush1.msra.mxu0 0.0
        %310 = vmatprep.subr.mxu0 0.0
        %311 = vmatpush1.msra.mxu0 0.0
        %312 = vmatprep.subr.mxu0 0.0
        %313 = vmatpush1.msra.mxu0 0.0
        %314 = vmatprep.subr.mxu0 0.0
        %315 = vmatpush1.msra.mxu0 0.0
        %316 = vmatprep.subr.mxu0 0.0
        %317 = vmatpush1.msra.mxu0 0.0
        %318 = vmatprep.subr.mxu0 0.0
        %319 = vmatpush1.msra.mxu0 0.0
        %320 = vmatprep.subr.mxu0 0.0
        %321 = vmatpush1.msra.mxu0 0.0
        %322 = vmatprep.subr.mxu0 0.0
        %323 = vmatpush1.msra.mxu0 0.0
        %324 = vmatprep.subr.mxu0 0.0
        %325 = vmatpush1.msra.mxu0 0.0
        %326 = vmatprep.subr.mxu0 0.0
        %327 = vmatpush1.msra.mxu0 0.0
        %328 = vmatprep.subr.mxu0 0.0
        %329 = vmatpush1.msra.mxu0 0.0
        %330 = vmatprep.subr.mxu0 0.0
        %331 = vmatpush1.msra.mxu0 0.0
        %332 = vmatprep.subr.mxu0 0.0
        %333 = vmatpush1.msra.mxu0 0.0
        %334 = vmatprep.subr.mxu0 0.0
        %335 = vmatpush1.msra.mxu0 0.0
        %336 = vmatprep.subr.mxu0 0.0
        %337 = vmatpush1.msra.mxu0 0.0
        %338 = vmatprep.subr.mxu0 0.0
        %339 = vmatpush1.msra.mxu0 0.0
        %340 = vmatprep.subr.mxu0 0.0
        %341 = vmatpush1.msra.mxu0 0.0
        %342 = vmatprep.subr.mxu0 0.0
        %343 = vmatpush1.msra.mxu0 0.0
        %344 = vmatprep.subr.mxu0 0.0
        %345 = vmatpush1.msra.mxu0 0.0
        %346 = vmatprep.subr.mxu0 0.0
        %347 = vmatpush1.msra.mxu0 0.0
        %348 = vmatprep.subr.mxu0 0.0
        %349 = vmatpush1.msra.mxu0 0.0
        %350 = vmatprep.subr.mxu0 0.0
        %351 = vmatpush1.msra.mxu0 0.0
        %352 = vmatprep.mubr.f32.mxu0 0.0
        %353 = vmatmul.mubr.f32.gmra.mrb[0].mxu0 %v286
        %v354 = vpop.f32.mrb[0].mxu0
        %v355 = vadd.f32 %v283, %v354
        %v356 = vpop.f32.mrb[0].mxu0
        %357 = vdwg.mxu0
        %v358 = vld [vmem:[%s2] sm:$0xff]
        %360 = vset.pattern.permute.xlu0 0
        %361 = vperm.xlu0 %360, %v358
        %v362 = vpop.permute.xlu0 %361
        %v364 = vadd.f32 %v355, %v362
        %v365 = vmax.f32 %v364, 0.0
        %vm366 = vcmask 121856
        %367 = vst.msk [vmem:[#allocation3] sm:$0xff] %vm366, %v365
        %s368 = scalar_lea.vmem %s1, 8
        %v369 = vld [vmem:[%s368] sm:$0xff]
        %v370 = vld [vmem:[#allocation3] sm:$0xff]
        %372 = vrot.lane.b32.xlu0 %v369, 120
        %v373 = vpop.permute.xlu0 %372
        %375 = vrot.lane.b32.xlu0 %v370, 127
        %v376 = vpop.permute.xlu0 %375
        %v378 = vsel %vm213, %v373, 0
        %380 = vmatprep.subr.mxu0 0.0
        %381 = vmatpush1.msra.mxu0 %v376
        %382 = vmatprep.subr.mxu0 0.0
        %383 = vmatpush1.msra.mxu0 0.0
        %384 = vmatprep.subr.mxu0 0.0
        %385 = vmatpush1.msra.mxu0 0.0
        %386 = vmatprep.subr.mxu0 0.0
        %387 = vmatpush1.msra.mxu0 0.0
        %388 = vmatprep.subr.mxu0 0.0
        %389 = vmatpush1.msra.mxu0 0.0
        %390 = vmatprep.subr.mxu0 0.0
        %391 = vmatpush1.msra.mxu0 0.0
        %392 = vmatprep.subr.mxu0 0.0
        %393 = vmatpush1.msra.mxu0 0.0
        %394 = vmatprep.subr.mxu0 0.0
        %395 = vmatpush1.msra.mxu0 0.0
        %396 = vmatprep.subr.mxu0 0.0
        %397 = vmatpush1.msra.mxu0 0.0
        %398 = vmatprep.subr.mxu0 0.0
        %399 = vmatpush1.msra.mxu0 0.0
        %400 = vmatprep.subr.mxu0 0.0
        %401 = vmatpush1.msra.mxu0 0.0
        %402 = vmatprep.subr.mxu0 0.0
        %403 = vmatpush1.msra.mxu0 0.0
        %404 = vmatprep.subr.mxu0 0.0
        %405 = vmatpush1.msra.mxu0 0.0
        %406 = vmatprep.subr.mxu0 0.0
        %407 = vmatpush1.msra.mxu0 0.0
        %408 = vmatprep.subr.mxu0 0.0
        %409 = vmatpush1.msra.mxu0 0.0
        %410 = vmatprep.subr.mxu0 0.0
        %411 = vmatpush1.msra.mxu0 0.0
        %412 = vmatprep.subr.mxu0 0.0
        %413 = vmatpush1.msra.mxu0 0.0
        %414 = vmatprep.subr.mxu0 0.0
        %415 = vmatpush1.msra.mxu0 0.0
        %416 = vmatprep.subr.mxu0 0.0
        %417 = vmatpush1.msra.mxu0 0.0
        %418 = vmatprep.subr.mxu0 0.0
        %419 = vmatpush1.msra.mxu0 0.0
        %420 = vmatprep.subr.mxu0 0.0
        %421 = vmatpush1.msra.mxu0 0.0
        %422 = vmatprep.subr.mxu0 0.0
        %423 = vmatpush1.msra.mxu0 0.0
        %424 = vmatprep.subr.mxu0 0.0
        %425 = vmatpush1.msra.mxu0 0.0
        %426 = vmatprep.subr.mxu0 0.0
        %427 = vmatpush1.msra.mxu0 0.0
        %428 = vmatprep.subr.mxu0 0.0
        %429 = vmatpush1.msra.mxu0 0.0
        %430 = vmatprep.subr.mxu0 0.0
        %431 = vmatpush1.msra.mxu0 0.0
        %432 = vmatprep.subr.mxu0 0.0
        %433 = vmatpush1.msra.mxu0 0.0
        %434 = vmatprep.subr.mxu0 0.0
        %435 = vmatpush1.msra.mxu0 0.0
        %436 = vmatprep.subr.mxu0 0.0
        %437 = vmatpush1.msra.mxu0 0.0
        %438 = vmatprep.subr.mxu0 0.0
        %439 = vmatpush1.msra.mxu0 0.0
        %440 = vmatprep.subr.mxu0 0.0
        %441 = vmatpush1.msra.mxu0 0.0
        %442 = vmatprep.subr.mxu0 0.0
        %443 = vmatpush1.msra.mxu0 0.0
        %444 = vmatprep.mubr.f32.mxu0 0.0
        %445 = vmatmul.mubr.f32.gmra.mrb[0].mxu0 %v378
        %v446 = vpop.f32.mrb[0].mxu0
        %v447 = vadd.f32 0.0, %v446
        %v448 = vpop.f32.mrb[0].mxu0
        %449 = vdwg.mxu0
        %v450 = vsel %vm213, %v369, 0
        %452 = vmatprep.subr.mxu0 0.0
        %453 = vmatpush1.msra.mxu0 %v370
        %454 = vmatprep.subr.mxu0 0.0
        %455 = vmatpush1.msra.mxu0 0.0
        %456 = vmatprep.subr.mxu0 0.0
        %457 = vmatpush1.msra.mxu0 0.0
        %458 = vmatprep.subr.mxu0 0.0
        %459 = vmatpush1.msra.mxu0 0.0
        %460 = vmatprep.subr.mxu0 0.0
        %461 = vmatpush1.msra.mxu0 0.0
        %462 = vmatprep.subr.mxu0 0.0
        %463 = vmatpush1.msra.mxu0 0.0
        %464 = vmatprep.subr.mxu0 0.0
        %465 = vmatpush1.msra.mxu0 0.0
        %466 = vmatprep.subr.mxu0 0.0
        %467 = vmatpush1.msra.mxu0 0.0
        %468 = vmatprep.subr.mxu0 0.0
        %469 = vmatpush1.msra.mxu0 0.0
        %470 = vmatprep.subr.mxu0 0.0
        %471 = vmatpush1.msra.mxu0 0.0
        %472 = vmatprep.subr.mxu0 0.0
        %473 = vmatpush1.msra.mxu0 0.0
        %474 = vmatprep.subr.mxu0 0.0
        %475 = vmatpush1.msra.mxu0 0.0
        %476 = vmatprep.subr.mxu0 0.0
        %477 = vmatpush1.msra.mxu0 0.0
        %478 = vmatprep.subr.mxu0 0.0
        %479 = vmatpush1.msra.mxu0 0.0
        %480 = vmatprep.subr.mxu0 0.0
        %481 = vmatpush1.msra.mxu0 0.0
        %482 = vmatprep.subr.mxu0 0.0
        %483 = vmatpush1.msra.mxu0 0.0
        %484 = vmatprep.subr.mxu0 0.0
        %485 = vmatpush1.msra.mxu0 0.0
        %486 = vmatprep.subr.mxu0 0.0
        %487 = vmatpush1.msra.mxu0 0.0
        %488 = vmatprep.subr.mxu0 0.0
        %489 = vmatpush1.msra.mxu0 0.0
        %490 = vmatprep.subr.mxu0 0.0
        %491 = vmatpush1.msra.mxu0 0.0
        %492 = vmatprep.subr.mxu0 0.0
        %493 = vmatpush1.msra.mxu0 0.0
        %494 = vmatprep.subr.mxu0 0.0
        %495 = vmatpush1.msra.mxu0 0.0
        %496 = vmatprep.subr.mxu0 0.0
        %497 = vmatpush1.msra.mxu0 0.0
        %498 = vmatprep.subr.mxu0 0.0
        %499 = vmatpush1.msra.mxu0 0.0
        %500 = vmatprep.subr.mxu0 0.0
        %501 = vmatpush1.msra.mxu0 0.0
        %502 = vmatprep.subr.mxu0 0.0
        %503 = vmatpush1.msra.mxu0 0.0
        %504 = vmatprep.subr.mxu0 0.0
        %505 = vmatpush1.msra.mxu0 0.0
        %506 = vmatprep.subr.mxu0 0.0
        %507 = vmatpush1.msra.mxu0 0.0
        %508 = vmatprep.subr.mxu0 0.0
        %509 = vmatpush1.msra.mxu0 0.0
        %510 = vmatprep.subr.mxu0 0.0
        %511 = vmatpush1.msra.mxu0 0.0
        %512 = vmatprep.subr.mxu0 0.0
        %513 = vmatpush1.msra.mxu0 0.0
        %514 = vmatprep.subr.mxu0 0.0
        %515 = vmatpush1.msra.mxu0 0.0
        %516 = vmatprep.mubr.f32.mxu0 0.0
        %517 = vmatmul.mubr.f32.gmra.mrb[0].mxu0 %v450
        %v518 = vpop.f32.mrb[0].mxu0
        %v519 = vadd.f32 %v447, %v518
        %v520 = vpop.f32.mrb[0].mxu0
        %521 = vdwg.mxu0
        %s522 = scalar_lea.vmem %s2, 8
        %v523 = vld [vmem:[%s522] sm:$0xff]
        %525 = vset.pattern.permute.xlu0 0
        %526 = vperm.xlu0 %525, %v523
        %v527 = vpop.permute.xlu0 %526
        %v529 = vadd.f32 %v519, %v527
        %v530 = vmax.f32 %v529, 0.0
        %vm531 = vcmask 113664
        %532 = vst.msk [vmem:[%s199] sm:$0xff] %vm531, %v530
        %s533 = sand.u32 %s110, 1
        %s534 = scalar_lea.sflag [#allocation6], %s533
        %s535 = sand.u32 %s110, 1
        %s536 = smul.addr %s535, 8
        %s537 = scalar_lea.vmem [#allocation7], %s536
        // Predicated region
        $region37: #{tpu_custom_call.1} parent=31 // pred_check
          %p538 = pneg %p120
        $region38: #{tpu_custom_call.1} parent=31 // pred_check_branch
          %540 = sbr.rel (%p538) target = $region40
        $region39: #{tpu_custom_call.1} parent=31 // pred_region
          %s542 = ssub.s32 128, 128
          %543 = vsyncadd %s534, %s542
          %s544 = sadd.s32 %s25, %s24
          %s545 = smul.addr %s544, 128
          %s546 = scalar_lea.hbm %s3, %s545
          %s548 = sshll.u32 %s537, 4
          %s549 = int_to_ptr.vmem [resolvable:$true] %s548
          %551 = dma.vmem_to_hbm [thread:$0]  %s549, 128, %s546, %s534
        $region40: #{tpu_custom_call.1} parent=31 // pred_fallthru
          _
      $region32: #{tpu_custom_call.1} parent=5 // pred_fallthru
        _
      %p552 = scmp.le.s32.totalorder 2, %s15
      // Predicated region
      $region41: #{tpu_custom_call.1} parent=5 // pred_check
        %p553 = pneg %p552
      $region42: #{tpu_custom_call.1} parent=5 // pred_check_branch
        %555 = sbr.rel (%p553) target = $region44
      $region43: #{tpu_custom_call.1} parent=5 // pred_region
        %s556 = ssub.s32 %s15, 2
        // Predicated region
        $region45: #{tpu_custom_call.1} parent=43 // pred_check
          %p557 = pneg %p126
        $region46: #{tpu_custom_call.1} parent=43 // pred_check_branch
          %559 = sbr.rel (%p557) target = $region48
        $region47: #{tpu_custom_call.1} parent=43 // pred_region
          %s560 = sand.u32 %s111, 1
          %s561 = scalar_lea.sflag [#allocation6], %s560
          %s562 = sand.u32 %s111, 1
          %s563 = smul.addr %s562, 8
          %s564 = scalar_lea.vmem [#allocation7], %s563
          %565 = dma.done %s561, 128
        $region48: #{tpu_custom_call.1} parent=43 // pred_fallthru
          _
      $region44: #{tpu_custom_call.1} parent=5 // pred_fallthru
        _
    $region6: #{tpu_custom_call.1} parent=1 // loop_footer
      %s19 = sadd.s32 1, %s15
    $region7: #{tpu_custom_call.1} parent=1 // loop_footer_branch
      %14 = sbr.rel target = $region3
    $region8: #{tpu_custom_call.1} parent=1 // loop_exit
      _
    %566 = vsyncpa [#allocation5], 1
    %s567 = scalar_lea.sflag [#allocation5], 1
    %568 = vsyncpa %s567, 1
    %569 = vsyncpa [#allocation6], 1
    %s570 = scalar_lea.sflag [#allocation6], 1
    %571 = vsyncpa %s570, 1

</llo_original>
